<compile_context>
chip_gen: v5e
topology: v5e:2x2
jax: 0.10.0
libtpu: 0.0.40
codegen_flags: <defaults>
</compile_context>

<pallas_src>
import functools

import jax
import jax.numpy as jnp
from jax.experimental import pallas as pl
from jax.experimental.pallas import tpu as pltpu

BN_EPS = 1e-5
LANE = 128      # lane width: Cout is padded up to a multiple of this
SUBLANE = 8


def _round_up(x, m):
    return (x + m - 1) // m * m


# ---------------------------------------------------------------------------
# Pass 1: conv GEMM tile + per-tile channel sum / sum-of-squares partials.
# ---------------------------------------------------------------------------
def _conv_gemm_stats_kernel(p_ref, w_ref, y_ref, psum_ref, psumsq_ref):
    # p_ref:   (TM, K)  im2col patch tile
    # w_ref:   (K, Cp)  flattened, channel-padded conv weight
    # y_ref:   (TM, Cp) un-normalized conv output tile
    # psum_ref / psumsq_ref: (8, Cp) per-tile channel partials, broadcast over
    # the 8 sublanes so the output block keeps an (8, 128)-aligned shape.
    y = jnp.dot(p_ref[...], w_ref[...], preferred_element_type=jnp.float32)
    y_ref[...] = y
    s = jnp.sum(y, axis=0, keepdims=True)
    ss = jnp.sum(y * y, axis=0, keepdims=True)
    psum_ref[...] = jnp.broadcast_to(s, psum_ref.shape)
    psumsq_ref[...] = jnp.broadcast_to(ss, psumsq_ref.shape)


# ---------------------------------------------------------------------------
# Pass 2: folded BatchNorm (one FMA per element) + SiLU, in place over y.
# ---------------------------------------------------------------------------
def _bn_silu_kernel(y_ref, scale_ref, shift_ref, o_ref):
    y = y_ref[...] * scale_ref[...] + shift_ref[...]
    o_ref[...] = (y * jax.nn.sigmoid(y)).astype(o_ref.dtype)


def _extract_patches(x_nchw, kh, kw, stride, padding):
    """im2col directly in (N, OH, OW, KH*KW*Cin) order (no amplified transpose)."""
    n, cin, h, w = x_nchw.shape
    oh = (h + 2 * padding - kh) // stride + 1
    ow = (w + 2 * padding - kw) // stride + 1
    x = jnp.transpose(x_nchw, (0, 2, 3, 1))          # small NCHW -> NHWC
    x = jnp.pad(x, ((0, 0), (padding, padding), (padding, padding), (0, 0)))
    cols = []
    for i in range(kh):
        for j in range(kw):
            cols.append(
                x[:, i: i + (oh - 1) * stride + 1: stride,
                     j: j + (ow - 1) * stride + 1: stride, :])
    patches = jnp.concatenate(cols, axis=-1)         # (N, OH, OW, KH*KW*Cin)
    return patches.reshape(n * oh * ow, kh * kw * cin), oh, ow


@functools.partial(jax.jit,
                   static_argnames=("stride", "padding", "block_m", "layout"))
def conv_bn_silu(x, weight, bias, gamma, beta, *, stride=1, padding=0,
                 block_m=1024, layout="NCHW"):
    """Forward of Conv2d + BatchNorm2d(train-mode batch stats) + SiLU.

    x: (N, Cin, H, W) f32; weight: (Cout, Cin, KH, KW); bias: (Cout,) is
    accepted for interface parity with nn.Conv2d but is unused: with train-mode
    BatchNorm the conv bias is cancelled exactly by the mean subtraction.
    gamma/beta: (Cout,) BN affine params. Returns NCHW (default) or NHWC.

    block_m: rows of the im2col matrix per grid step. ~1024 is safe on
    v5e/v6e/v7x at small K/Cp (well under the scoped-VMEM default even with
    double buffering); v6e can go to ~2048.
    """
    del bias  # mathematically a no-op under train-mode BN

    n, cin, h, w = x.shape
    cout, _, kh, kw = weight.shape

    patches, oh, ow = _extract_patches(x, kh, kw, stride, padding)
    m, k = patches.shape

    # Lane-dense output channels: pad Cout -> multiple of 128. Padded channels
    # produce y == 0 everywhere (zero weight cols), and gamma/beta padded with 0
    # keep them exactly 0 after the BN+SiLU epilogue; they are sliced off below.
    cp = _round_up(cout, LANE)
    wmat = jnp.transpose(weight, (2, 3, 1, 0)).reshape(k, cout)   # (KH,KW,Cin) order
    wmat = jnp.pad(wmat.astype(jnp.float32), ((0, 0), (0, cp - cout)))
    gamma_p = jnp.pad(gamma.astype(jnp.float32), (0, cp - cout))
    beta_p = jnp.pad(beta.astype(jnp.float32), (0, cp - cout))

    # Tile M. Padded rows are all-zero patches -> contribute exactly 0 to the BN
    # sums (we divide by the true M), and their outputs are sliced off.
    tm = min(_round_up(block_m, SUBLANE), _round_up(m, SUBLANE))
    mpad = _round_up(m, tm)
    num_tiles = mpad // tm
    patches = jnp.pad(patches.astype(jnp.float32), ((0, mpad - m), (0, 0)))

    y_flat, psum, psumsq = pl.pallas_call(
        _conv_gemm_stats_kernel,
        out_shape=(
            jax.ShapeDtypeStruct((mpad, cp), jnp.float32),
            jax.ShapeDtypeStruct((num_tiles * SUBLANE, cp), jnp.float32),
            jax.ShapeDtypeStruct((num_tiles * SUBLANE, cp), jnp.float32),
        ),
        grid=(num_tiles,),
        in_specs=[
            pl.BlockSpec((tm, k), lambda i: (i, 0)),
            pl.BlockSpec((k, cp), lambda i: (0, 0)),
        ],
        out_specs=[
            pl.BlockSpec((tm, cp), lambda i: (i, 0)),
            pl.BlockSpec((SUBLANE, cp), lambda i: (i, 0)),
            pl.BlockSpec((SUBLANE, cp), lambda i: (i, 0)),
        ],
        compiler_params=pltpu.CompilerParams(
            dimension_semantics=("parallel",)),
    )(patches, wmat)

    # O(Cout) glue: reduce the per-tile partials and fold BN into one FMA.
    inv_m = 1.0 / float(m)                      # true M, not the padded M
    ch_sum = jnp.sum(psum[::SUBLANE, :], axis=0)
    ch_sumsq = jnp.sum(psumsq[::SUBLANE, :], axis=0)
    mean = ch_sum * inv_m
    var = jnp.maximum(ch_sumsq * inv_m - mean * mean, 0.0)
    scale = gamma_p * jax.lax.rsqrt(var + BN_EPS)
    shift = beta_p - mean * scale

    out_flat = pl.pallas_call(
        _bn_silu_kernel,
        out_shape=jax.ShapeDtypeStruct((mpad, cp), jnp.float32),
        grid=(num_tiles,),
        in_specs=[
            pl.BlockSpec((tm, cp), lambda i: (i, 0)),
            pl.BlockSpec((1, cp), lambda i: (0, 0)),
            pl.BlockSpec((1, cp), lambda i: (0, 0)),
        ],
        out_specs=pl.BlockSpec((tm, cp), lambda i: (i, 0)),
        input_output_aliases={0: 0},            # write SiLU(BN(y)) in place over y
        compiler_params=pltpu.CompilerParams(
            dimension_semantics=("parallel",)),
    )(y_flat, scale.reshape(1, cp), shift.reshape(1, cp))

    out = out_flat[:m, :cout].reshape(n, oh, ow, cout)
    if layout == "NCHW":
        out = out.transpose(0, 3, 1, 2)
    return out


def _reference(x, weight, bias, gamma, beta, stride, padding):
    y = jax.lax.conv_general_dilated(
        x, weight, window_strides=(stride, stride),
        padding=[(padding, padding), (padding, padding)],
        dimension_numbers=("NCHW", "OIHW", "NCHW"),
    ) + bias.reshape(1, -1, 1, 1)
    mean = jnp.mean(y, axis=(0, 2, 3), keepdims=True)
    var = jnp.mean(jnp.square(y - mean), axis=(0, 2, 3), keepdims=True)
    y = (y - mean) * jax.lax.rsqrt(var + BN_EPS)
    y = gamma.reshape(1, -1, 1, 1) * y + beta.reshape(1, -1, 1, 1)
    return y * jax.nn.sigmoid(y)


if __name__ == "__main__":
    # ConvBnSiLu(in_channels=4, out_channels=8, kernel_size=3, stride=1, padding=1)
    in_channels, out_channels, kernel_size, stride, padding = 4, 8, 3, 1, 1

    key = jax.random.PRNGKey(0)
    kx, kw, kb = jax.random.split(key, 3)
    x = jax.random.normal(kx, (2, in_channels, 16, 16), dtype=jnp.float32)

    fan_in = in_channels * kernel_size * kernel_size
    bound = 1.0 / (fan_in ** 0.5)
    weight = jax.random.uniform(
        kw, (out_channels, in_channels, kernel_size, kernel_size),
        minval=-bound, maxval=bound, dtype=jnp.float32)
    bias = jax.random.uniform(kb, (out_channels,), minval=-bound, maxval=bound,
                              dtype=jnp.float32)
    gamma = jnp.ones((out_channels,), jnp.float32)   # BatchNorm2d default weight
    beta = jnp.zeros((out_channels,), jnp.float32)   # BatchNorm2d default bias

    # block_m=128 exercises a multi-step (4-tile) pipelined grid at this size;
    # real shapes should use the default (~1024, or ~2048 on v6e).
    out = conv_bn_silu(x, weight, bias, gamma, beta,
                       stride=stride, padding=padding, block_m=128)
    out = jax.block_until_ready(out)

    ref = _reference(x, weight, bias, gamma, beta, stride, padding)
    assert out.shape == (2, out_channels, 16, 16)
    assert jnp.allclose(out, ref, rtol=1e-3, atol=1e-3)

    print("KERNEL_OK")
</pallas_src>

<mosaic_0001>
module attributes {stable_mosaic.version = 11 : i64} {
  func.func @_conv_gemm_stats_kernel(%arg0: i32, %arg1: memref<128x36xf32, #tpu.memory_space<vmem>>, %arg2: memref<36x128xf32, #tpu.memory_space<vmem>>, %arg3: memref<128x128xf32, #tpu.memory_space<vmem>>, %arg4: memref<8x128xf32, #tpu.memory_space<vmem>>, %arg5: memref<8x128xf32, #tpu.memory_space<vmem>>) attributes {dimension_semantics = [#tpu.dimension_semantics<parallel>], iteration_bounds = array<i64: 4>, scalar_prefetch = 0 : i64, scratch_operands = 0 : i64, tpu.core_type = #tpu.core_type<tc>, window_params = [{transform_indices = @transform_0, window_bounds = array<i64: 128, 36>}, {pipeline_mode = #tpu.pipeline_mode<synchronous>, transform_indices = @transform_1, window_bounds = array<i64: 36, 128>}, {transform_indices = @transform_2, window_bounds = array<i64: 128, 128>}, {transform_indices = @transform_3, window_bounds = array<i64: 8, 128>}, {transform_indices = @transform_4, window_bounds = array<i64: 8, 128>}]} {
    %c0 = arith.constant 0 : index
    %c0_0 = arith.constant 0 : index
    %0 = vector.load %arg1[%c0, %c0_0] : memref<128x36xf32, #tpu.memory_space<vmem>>, vector<128x36xf32>
    %c0_1 = arith.constant 0 : index
    %c0_2 = arith.constant 0 : index
    %1 = vector.load %arg2[%c0_1, %c0_2] : memref<36x128xf32, #tpu.memory_space<vmem>>, vector<36x128xf32>
    %cst = arith.constant dense<0.000000e+00> : vector<128x128xf32>
    %2 = tpu.matmul %0, %1, %cst {dimension_numbers = #tpu.dot_dimension_numbers<[1], [0], [0], [1], [0, 0, 1, 1], [], []>} : vector<128x36xf32>, vector<36x128xf32>, vector<128x128xf32> -> vector<128x128xf32>
    %c0_3 = arith.constant 0 : index
    %c0_4 = arith.constant 0 : index
    %3 = vector.load %arg3[%c0_3, %c0_4] : memref<128x128xf32, #tpu.memory_space<vmem>>, vector<128x128xf32>
    tpu.vector_store %arg3[%c0_3, %c0_4], %2 {strides = array<i32>} : memref<128x128xf32, #tpu.memory_space<vmem>>, vector<128x128xf32>,
    %cst_5 = arith.constant dense<0.000000e+00> : vector<128xf32>
    %4 = vector.multi_reduction <add>, %2, %cst_5 [0] : vector<128x128xf32> to vector<128xf32>
    %5 = vector.shape_cast %4 : vector<128xf32> to vector<1x128xf32>
    %6 = arith.mulf %2, %2 : vector<128x128xf32>
    %cst_6 = arith.constant dense<0.000000e+00> : vector<128xf32>
    %7 = vector.multi_reduction <add>, %6, %cst_6 [0] : vector<128x128xf32> to vector<128xf32>
    %8 = vector.shape_cast %7 : vector<128xf32> to vector<1x128xf32>
    %9 = vector.shape_cast %5 : vector<1x128xf32> to vector<1x128xf32>
    %10 = vector.broadcast %9 : vector<1x128xf32> to vector<8x128xf32>
    %c0_7 = arith.constant 0 : index
    %c0_8 = arith.constant 0 : index
    %11 = vector.load %arg4[%c0_7, %c0_8] : memref<8x128xf32, #tpu.memory_space<vmem>>, vector<8x128xf32>
    tpu.vector_store %arg4[%c0_7, %c0_8], %10 {strides = array<i32>} : memref<8x128xf32, #tpu.memory_space<vmem>>, vector<8x128xf32>,
    %12 = vector.shape_cast %8 : vector<1x128xf32> to vector<1x128xf32>
    %13 = vector.broadcast %12 : vector<1x128xf32> to vector<8x128xf32>
    %c0_9 = arith.constant 0 : index
    %c0_10 = arith.constant 0 : index
    %14 = vector.load %arg5[%c0_9, %c0_10] : memref<8x128xf32, #tpu.memory_space<vmem>>, vector<8x128xf32>
    tpu.vector_store %arg5[%c0_9, %c0_10], %13 {strides = array<i32>} : memref<8x128xf32, #tpu.memory_space<vmem>>, vector<8x128xf32>,
    return
  }
  func.func @transform_0(%arg0: i32) -> (i32, i32) {
    %c0_i32 = arith.constant 0 : i32
    %c0_i32_0 = arith.constant 0 : i32
    return %arg0, %c0_i32 : i32, i32
  }
  func.func @transform_1(%arg0: i32) -> (i32, i32) {
    %c0_i32 = arith.constant 0 : i32
    %c0_i32_0 = arith.constant 0 : i32
    %c0_i32_1 = arith.constant 0 : i32
    return %c0_i32, %c0_i32_0 : i32, i32
  }
  func.func @transform_2(%arg0: i32) -> (i32, i32) {
    %c0_i32 = arith.constant 0 : i32
    %c0_i32_0 = arith.constant 0 : i32
    return %arg0, %c0_i32 : i32, i32
  }
  func.func @transform_3(%arg0: i32) -> (i32, i32) {
    %c0_i32 = arith.constant 0 : i32
    %c0_i32_0 = arith.constant 0 : i32
    return %arg0, %c0_i32 : i32, i32
  }
  func.func @transform_4(%arg0: i32) -> (i32, i32) {
    %c0_i32 = arith.constant 0 : i32
    %c0_i32_0 = arith.constant 0 : i32
    return %arg0, %c0_i32 : i32, i32
  }
}

module attributes {stable_mosaic.version = 11 : i64} {
  func.func @_bn_silu_kernel(%arg0: i32, %arg1: memref<128x128xf32, #tpu.memory_space<vmem>>, %arg2: memref<1x128xf32, #tpu.memory_space<vmem>>, %arg3: memref<1x128xf32, #tpu.memory_space<vmem>>, %arg4: memref<128x128xf32, #tpu.memory_space<vmem>>) attributes {dimension_semantics = [#tpu.dimension_semantics<parallel>], iteration_bounds = array<i64: 4>, scalar_prefetch = 0 : i64, scratch_operands = 0 : i64, tpu.core_type = #tpu.core_type<tc>, window_params = [{transform_indices = @transform_0, window_bounds = array<i64: 128, 128>}, {pipeline_mode = #tpu.pipeline_mode<synchronous>, transform_indices = @transform_1, window_bounds = array<i64: 1, 128>}, {pipeline_mode = #tpu.pipeline_mode<synchronous>, transform_indices = @transform_2, window_bounds = array<i64: 1, 128>}, {transform_indices = @transform_3, window_bounds = array<i64: 128, 128>}]} {
    %c0 = arith.constant 0 : index
    %c0_0 = arith.constant 0 : index
    %0 = vector.load %arg1[%c0, %c0_0] : memref<128x128xf32, #tpu.memory_space<vmem>>, vector<128x128xf32>
    %c0_1 = arith.constant 0 : index
    %c0_2 = arith.constant 0 : index
    %1 = vector.load %arg2[%c0_1, %c0_2] : memref<1x128xf32, #tpu.memory_space<vmem>>, vector<1x128xf32>
    %2 = vector.broadcast %1 : vector<1x128xf32> to vector<128x128xf32>
    %3 = arith.mulf %0, %2 : vector<128x128xf32>
    %c0_3 = arith.constant 0 : index
    %c0_4 = arith.constant 0 : index
    %4 = vector.load %arg3[%c0_3, %c0_4] : memref<1x128xf32, #tpu.memory_space<vmem>>, vector<1x128xf32>
    %5 = vector.broadcast %4 : vector<1x128xf32> to vector<128x128xf32>
    %6 = arith.addf %3, %5 : vector<128x128xf32>
    %7 = arith.negf %6 : vector<128x128xf32>
    %8 = math.exp %7 : vector<128x128xf32>
    %cst = arith.constant 1.000000e+00 : f32
    %9 = vector.broadcast %cst : f32 to vector<128x128xf32>
    %10 = arith.addf %9, %8 : vector<128x128xf32>
    %11 = arith.divf %9, %10 : vector<128x128xf32>
    %12 = arith.mulf %6, %11 : vector<128x128xf32>
    %c0_5 = arith.constant 0 : index
    %c0_6 = arith.constant 0 : index
    %13 = vector.load %arg4[%c0_5, %c0_6] : memref<128x128xf32, #tpu.memory_space<vmem>>, vector<128x128xf32>
    tpu.vector_store %arg4[%c0_5, %c0_6], %12 {strides = array<i32>} : memref<128x128xf32, #tpu.memory_space<vmem>>, vector<128x128xf32>,
    return
  }
  func.func @transform_0(%arg0: i32) -> (i32, i32) {
    %c0_i32 = arith.constant 0 : i32
    %c0_i32_0 = arith.constant 0 : i32
    return %arg0, %c0_i32 : i32, i32
  }
  func.func @transform_1(%arg0: i32) -> (i32, i32) {
    %c0_i32 = arith.constant 0 : i32
    %c0_i32_0 = arith.constant 0 : i32
    %c0_i32_1 = arith.constant 0 : i32
    return %c0_i32, %c0_i32_0 : i32, i32
  }
  func.func @transform_2(%arg0: i32) -> (i32, i32) {
    %c0_i32 = arith.constant 0 : i32
    %c0_i32_0 = arith.constant 0 : i32
    %c0_i32_1 = arith.constant 0 : i32
    return %c0_i32, %c0_i32_0 : i32, i32
  }
  func.func @transform_3(%arg0: i32) -> (i32, i32) {
    %c0_i32 = arith.constant 0 : i32
    %c0_i32_0 = arith.constant 0 : i32
    return %arg0, %c0_i32 : i32, i32
  }
}

</mosaic_0001>

<llo_original>
// kernel: conv_bn_silu.2
$region0: #{conv_bn_silu.2}
  #allocation0 [shape = 'u32[]', space=smem, size = 0x4, offset = 0x4, fixed_abs, tag = 'smem constant byte address 0x4 - core index']
  #allocation1 [shape = 'u32[72,128]{1,0:T(1,128)}', space=vmem, size = 0x9000, scoped, tag = 'internal scratch']
  %s0 = inlined_call_operand.vmem [shape: f32[512,36], index: 0, kind: input, shape index: {}]
  %s1 = inlined_call_operand.vmem [shape: f32[36,128], index: 1, kind: input, shape index: {}]
  %s2 = inlined_call_operand.vmem [shape: f32[512,128], index: 2, kind: output, shape index: {0}]
  %s3 = inlined_call_operand.vmem [shape: f32[32,128], index: 3, kind: output, shape index: {1}]
  %s4 = inlined_call_operand.vmem [shape: f32[32,128], index: 4, kind: output, shape index: {2}]
  %5 = xla_tuple %s2, %s3, %s4
  %s6 = sld [smem:[#allocation0]]
  $region57: #{conv_bn_silu.2} parent=0
    _
  %s8 = ssub.s32 1, %s6
  %s9 = scalar_select 0, %s8, %s6
  loop: start=0, step=1, limit=6
  $region2: #{conv_bn_silu.2} parent=0 // loop_pre_header
    _
  $region3: #{conv_bn_silu.2} parent=0 // loop_header
    %s11 = sphi 0, %s15
    %p12 = scmp.ge.s32.totalorder %s11, 6
    %s21 = sphi 0, %s23
    %s24 = sphi 0, %s21
    %s25 = sphi 0, %s24
    %s41 = sphi 0, %s25
    %s45 = sphi 0, %s45
    %s47 = sphi 0, %s45
    %s48 = sphi 0, %s47
    %s62 = sphi 0, %s48
    %s68 = sphi 0, %s70
    %s71 = sphi 0, %s68
    %s72 = sphi 0, %s71
    %s88 = sphi 0, %s72
    %s94 = sphi 0, %s96
    %s97 = sphi 0, %s94
    %s98 = sphi 0, %s97
    %s114 = sphi 0, %s98
    %s120 = sphi 0, %s122
    %s123 = sphi 0, %s120
    %s124 = sphi 0, %s123
    %s140 = sphi 0, %s124
  $region4: #{conv_bn_silu.2} parent=0 // loop_header_branch
    %14 = sbr.rel (%p12) target = $region8
  $region5: #{conv_bn_silu.2} parent=0 // loop_body
    %s16 = ssub.s32 %s11, 1
    %s17 = ssub.s32 %s11, 2
    %s18 = sadd.s32 %s11, 1
    %s19 = ssub.s32 %s11, %s18
    %p20 = scmp.eq.s32.totalorder %s19, 0
    %s22 = sadd.s32 %s21, 1
    %s23 = scalar_select %p20, %s21, %s22
    %p26 = pneg %p20
    %p27 = scmp.eq.s32.totalorder %s11, 3
    %p28 = por %p26, %p27
    %p29 = scmp.ne.s32.totalorder %s21, %s24
    %p30 = scmp.eq.s32.totalorder %s11, 0
    %p31 = por %p29, %p30
    %p32 = scmp.ne.s32.totalorder %s21, %s24
    %p33 = scmp.eq.s32.totalorder %s16, 3
    %p34 = por %p32, %p33
    %p35 = scmp.ne.s32.totalorder %s24, %s25
    %p36 = scmp.eq.s32.totalorder %s16, 0
    %p37 = por %p35, %p36
    %p38 = scmp.ne.s32.totalorder %s24, %s25
    %p39 = scmp.eq.s32.totalorder %s17, 3
    %p40 = por %p38, %p39
    %p42 = scmp.ne.s32.totalorder %s25, %s41
    %p43 = scmp.eq.s32.totalorder %s17, 0
    %p44 = por %p42, %p43
    %s46 = sadd.s32 %s45, 1
    %p49 = scmp.eq.s32.totalorder %s11, 3
    %p50 = scmp.ne.s32.totalorder %s45, %s47
    %p51 = scmp.eq.s32.totalorder %s11, 0
    %p52 = por %p50, %p51
    %p53 = scmp.ne.s32.totalorder %s45, %s47
    %p54 = scmp.eq.s32.totalorder %s16, 3
    %p55 = por %p53, %p54
    %p56 = scmp.ne.s32.totalorder %s47, %s48
    %p57 = scmp.eq.s32.totalorder %s16, 0
    %p58 = por %p56, %p57
    %p59 = scmp.ne.s32.totalorder %s47, %s48
    %p60 = scmp.eq.s32.totalorder %s17, 3
    %p61 = por %p59, %p60
    %p63 = scmp.ne.s32.totalorder %s48, %s62
    %p64 = scmp.eq.s32.totalorder %s17, 0
    %p65 = por %p63, %p64
    %s66 = ssub.s32 %s11, %s18
    %p67 = scmp.eq.s32.totalorder %s66, 0
    %s69 = sadd.s32 %s68, 1
    %s70 = scalar_select %p67, %s68, %s69
    %p73 = pneg %p67
    %p74 = scmp.eq.s32.totalorder %s11, 3
    %p75 = por %p73, %p74
    %p76 = scmp.ne.s32.totalorder %s68, %s71
    %p77 = scmp.eq.s32.totalorder %s11, 0
    %p78 = por %p76, %p77
    %p79 = scmp.ne.s32.totalorder %s68, %s71
    %p80 = scmp.eq.s32.totalorder %s16, 3
    %p81 = por %p79, %p80
    %p82 = scmp.ne.s32.totalorder %s71, %s72
    %p83 = scmp.eq.s32.totalorder %s16, 0
    %p84 = por %p82, %p83
    %p85 = scmp.ne.s32.totalorder %s71, %s72
    %p86 = scmp.eq.s32.totalorder %s17, 3
    %p87 = por %p85, %p86
    %p89 = scmp.ne.s32.totalorder %s72, %s88
    %p90 = scmp.eq.s32.totalorder %s17, 0
    %p91 = por %p89, %p90
    %s92 = ssub.s32 %s11, %s18
    %p93 = scmp.eq.s32.totalorder %s92, 0
    %s95 = sadd.s32 %s94, 1
    %s96 = scalar_select %p93, %s94, %s95
    %p99 = pneg %p93
    %p100 = scmp.eq.s32.totalorder %s11, 3
    %p101 = por %p99, %p100
    %p102 = scmp.ne.s32.totalorder %s94, %s97
    %p103 = scmp.eq.s32.totalorder %s11, 0
    %p104 = por %p102, %p103
    %p105 = scmp.ne.s32.totalorder %s94, %s97
    %p106 = scmp.eq.s32.totalorder %s16, 3
    %p107 = por %p105, %p106
    %p108 = scmp.ne.s32.totalorder %s97, %s98
    %p109 = scmp.eq.s32.totalorder %s16, 0
    %p110 = por %p108, %p109
    %p111 = scmp.ne.s32.totalorder %s97, %s98
    %p112 = scmp.eq.s32.totalorder %s17, 3
    %p113 = por %p111, %p112
    %p115 = scmp.ne.s32.totalorder %s98, %s114
    %p116 = scmp.eq.s32.totalorder %s17, 0
    %p117 = por %p115, %p116
    %s118 = ssub.s32 %s11, %s18
    %p119 = scmp.eq.s32.totalorder %s118, 0
    %s121 = sadd.s32 %s120, 1
    %s122 = scalar_select %p119, %s120, %s121
    %p125 = pneg %p119
    %p126 = scmp.eq.s32.totalorder %s11, 3
    %p127 = por %p125, %p126
    %p128 = scmp.ne.s32.totalorder %s120, %s123
    %p129 = scmp.eq.s32.totalorder %s11, 0
    %p130 = por %p128, %p129
    %p131 = scmp.ne.s32.totalorder %s120, %s123
    %p132 = scmp.eq.s32.totalorder %s16, 3
    %p133 = por %p131, %p132
    %p134 = scmp.ne.s32.totalorder %s123, %s124
    %p135 = scmp.eq.s32.totalorder %s16, 0
    %p136 = por %p134, %p135
    %p137 = scmp.ne.s32.totalorder %s123, %s124
    %p138 = scmp.eq.s32.totalorder %s17, 3
    %p139 = por %p137, %p138
    %p141 = scmp.ne.s32.totalorder %s124, %s140
    %p142 = scmp.eq.s32.totalorder %s17, 0
    %p143 = por %p141, %p142
    %p144 = scmp.le.s32.totalorder 1, %s11
    %p145 = scmp.lt.s32.totalorder %s11, 5
    %p146 = pnand %p144, %p145
    %p147 = pneg %p146
    // Predicated region
    $region9: #{conv_bn_silu.2} parent=5 // pred_check
      _
    $region10: #{conv_bn_silu.2} parent=5 // pred_check_branch
      %149 = sbr.rel (%p146) target = $region12
    $region11: #{conv_bn_silu.2} parent=5 // pred_region
      %s150 = ssub.s32 %s11, 1
      // Predicated region
      $region13: #{conv_bn_silu.2} parent=11 // pred_check
        %p151 = pneg %p58
      $region14: #{conv_bn_silu.2} parent=11 // pred_check_branch
        %153 = sbr.rel (%p151) target = $region16
      $region15: #{conv_bn_silu.2} parent=11 // pred_region
        _
      $region16: #{conv_bn_silu.2} parent=11 // pred_fallthru
        _
    $region12: #{conv_bn_silu.2} parent=5 // pred_fallthru
      _
    %p154 = scmp.lt.s32.totalorder %s11, 4
    // Predicated region
    $region17: #{conv_bn_silu.2} parent=5 // pred_check
      %p155 = pneg %p154
    $region18: #{conv_bn_silu.2} parent=5 // pred_check_branch
      %157 = sbr.rel (%p155) target = $region20
    $region19: #{conv_bn_silu.2} parent=5 // pred_region
      // Predicated region
      $region21: #{conv_bn_silu.2} parent=19 // pred_check
        %p158 = pneg %p31
      $region22: #{conv_bn_silu.2} parent=19 // pred_check_branch
        %160 = sbr.rel (%p158) target = $region24
      $region23: #{conv_bn_silu.2} parent=19 // pred_region
        %s161 = smul.u32 16, %s11
        %p162 = scmp.lt.s32.totalorder %s161, 63
        %s163 = scalar_select %p162, %s161, 63
        %s164 = smul.addr %s163, 8
        %s165 = scalar_lea.vmem %s0, %s164
        %s166 = smul.u32 16, %s11
      $region24: #{conv_bn_silu.2} parent=19 // pred_fallthru
        _
    $region20: #{conv_bn_silu.2} parent=5 // pred_fallthru
      _
    %p167 = scmp.le.s32.totalorder 1, %s11
    %p168 = scmp.lt.s32.totalorder %s11, 5
    %p169 = pnand %p167, %p168
    %p170 = pneg %p169
    // Predicated region
    $region25: #{conv_bn_silu.2} parent=5 // pred_check
      _
    $region26: #{conv_bn_silu.2} parent=5 // pred_check_branch
      %172 = sbr.rel (%p169) target = $region28
    $region27: #{conv_bn_silu.2} parent=5 // pred_region
      %s173 = ssub.s32 %s11, 1
      %s174 = smul.u32 16, %s16
      %p175 = scmp.lt.s32.totalorder %s174, 63
      %s176 = scalar_select %p175, %s174, 63
      %s177 = smul.addr %s176, 8
      %s178 = scalar_lea.vmem %s0, %s177
      %p179 = pneg %p37
      %p180 = pneg %p34
      %p181 = pneg %p58
      %p182 = pneg %p55
      %p183 = pneg %p84
      %p184 = pneg %p81
      %s185 = smul.u32 16, %s16
      %p186 = scmp.lt.s32.totalorder %s185, 63
      %s187 = scalar_select %p186, %s185, 63
      %s188 = smul.addr %s187, 8
      %s189 = scalar_lea.vmem %s2, %s188
      %p190 = pneg %p110
      %p191 = pneg %p107
      %p192 = scmp.lt.s32.totalorder %s16, 3
      %s193 = scalar_select %p192, %s16, 3
      %s194 = smul.addr %s193, 8
      %s195 = scalar_lea.vmem %s3, %s194
      %p196 = pneg %p136
      %p197 = pneg %p133
      %p198 = scmp.lt.s32.totalorder %s16, 3
      %s199 = scalar_select %p198, %s16, 3
      %s200 = smul.addr %s199, 8
      %s201 = scalar_lea.vmem %s4, %s200
      %s202 = smul.u32 16, %s16
      %p203 = scmp.lt.s32.totalorder %s202, 63
      %s204 = scalar_select %p203, %s202, 63
      %s205 = smul.addr %s204, 8
      %s206 = scalar_lea.vmem %s0, %s205
      %s207 = smul.u32 16, %s16
      %s208 = smul.u32 16, %s16
      %p209 = scmp.lt.s32.totalorder %s208, 63
      %s210 = scalar_select %p209, %s208, 63
      %s211 = smul.addr %s210, 8
      %s212 = scalar_lea.vmem %s2, %s211
      %s213 = smul.u32 16, %s16
      %p214 = scmp.lt.s32.totalorder %s16, 3
      %s215 = scalar_select %p214, %s16, 3
      %s216 = smul.addr %s215, 8
      %s217 = scalar_lea.vmem %s3, %s216
      %p218 = scmp.lt.s32.totalorder %s16, 3
      %s219 = scalar_select %p218, %s16, 3
      %s220 = smul.addr %s219, 8
      %s221 = scalar_lea.vmem %s4, %s220
      %v222 = vld [vmem:[%s206] sm:$0xff]
      %v223 = vld [vmem:[%s206 + $0x8] sm:$0xff]
      %v224 = vld [vmem:[%s206 + $0x10] sm:$0xff]
      %v225 = vld [vmem:[%s206 + $0x18] sm:$0xff]
      %v226 = vld [vmem:[%s206 + $0x20] sm:$0xff]
      %v227 = vld [vmem:[%s206 + $0x28] sm:$0xff]
      %v228 = vld [vmem:[%s206 + $0x30] sm:$0xff]
      %v229 = vld [vmem:[%s206 + $0x38] sm:$0xff]
      %v230 = vld [vmem:[%s206 + $0x40] sm:$0xff]
      %v231 = vld [vmem:[%s206 + $0x48] sm:$0xff]
      %v232 = vld [vmem:[%s206 + $0x50] sm:$0xff]
      %v233 = vld [vmem:[%s206 + $0x58] sm:$0xff]
      %v234 = vld [vmem:[%s206 + $0x60] sm:$0xff]
      %v235 = vld [vmem:[%s206 + $0x68] sm:$0xff]
      %v236 = vld [vmem:[%s206 + $0x70] sm:$0xff]
      %v237 = vld [vmem:[%s206 + $0x78] sm:$0xff]
      %v238 = vld [vmem:[%s1] sm:$0xff]
      %v239 = vld [vmem:[%s1 + $0x8] sm:$0xff]
      %v240 = vld [vmem:[%s1 + $0x10] sm:$0xff]
      %v241 = vld [vmem:[%s1 + $0x18] sm:$0xff]
      %v242 = vld [vmem:[%s1 + $0x20] sm:$0xf]
      %vm243 = vcmask 293888
      %v245 = vsel %vm243, %v222, 0
      %v248 = vsel %vm243, %v223, 0
      %v251 = vsel %vm243, %v224, 0
      %v254 = vsel %vm243, %v225, 0
      %v257 = vsel %vm243, %v226, 0
      %v260 = vsel %vm243, %v227, 0
      %v263 = vsel %vm243, %v228, 0
      %v266 = vsel %vm243, %v229, 0
      %v269 = vsel %vm243, %v230, 0
      %v272 = vsel %vm243, %v231, 0
      %v275 = vsel %vm243, %v232, 0
      %v278 = vsel %vm243, %v233, 0
      %v281 = vsel %vm243, %v234, 0
      %v284 = vsel %vm243, %v235, 0
      %v287 = vsel %vm243, %v236, 0
      %v290 = vsel %vm243, %v237, 0
      %vm292 = vcmask 1043456
      %v294 = vsel %vm292, %v242, 0
      %296 = vmatpush.msra.mxu0 0.0
      %297 = vmatpush.msra.mxu0 0.0
      %298 = vmatpush.msra.mxu0 0.0
      %299 = vmatpush.msra.mxu0 0.0
      %300 = vmatpush.msra.mxu0 0.0
      %301 = vmatpush.msra.mxu0 0.0
      %302 = vmatpush.msra.mxu0 0.0
      %303 = vmatpush.msra.mxu0 0.0
      %304 = vmatpush.msra.mxu0 0.0
      %305 = vmatpush.msra.mxu0 0.0
      %306 = vmatpush.msra.mxu0 0.0
      %307 = vmatpush.msra.mxu0 %v294
      %308 = vmatpush.msra.mxu0 %v241
      %309 = vmatpush.msra.mxu0 %v240
      %310 = vmatpush.msra.mxu0 %v239
      %311 = vmatpush.msra.mxu0 %v238
      %312 = vmatmul.f32.gmra.mxu0 %v245
      %v313 = vpop.f32.mrf.mxu0
      %v314 = vadd.f32 0.0, %v313
      %315 = vmatmul.f32.gmra.mxu0 %v248
      %v316 = vpop.f32.mrf.mxu0
      %v317 = vadd.f32 0.0, %v316
      %318 = vmatmul.f32.gmra.mxu0 %v251
      %v319 = vpop.f32.mrf.mxu0
      %v320 = vadd.f32 0.0, %v319
      %321 = vmatmul.f32.gmra.mxu0 %v254
      %v322 = vpop.f32.mrf.mxu0
      %v323 = vadd.f32 0.0, %v322
      %324 = vmatmul.f32.gmra.mxu0 %v257
      %v325 = vpop.f32.mrf.mxu0
      %v326 = vadd.f32 0.0, %v325
      %327 = vmatmul.f32.gmra.mxu0 %v260
      %v328 = vpop.f32.mrf.mxu0
      %v329 = vadd.f32 0.0, %v328
      %330 = vmatmul.f32.gmra.mxu0 %v263
      %v331 = vpop.f32.mrf.mxu0
      %v332 = vadd.f32 0.0, %v331
      %333 = vmatmul.f32.gmra.mxu0 %v266
      %v334 = vpop.f32.mrf.mxu0
      %v335 = vadd.f32 0.0, %v334
      %336 = vmatmul.f32.gmra.mxu0 %v269
      %v337 = vpop.f32.mrf.mxu0
      %v338 = vadd.f32 0.0, %v337
      %339 = vmatmul.f32.gmra.mxu0 %v272
      %v340 = vpop.f32.mrf.mxu0
      %v341 = vadd.f32 0.0, %v340
      %342 = vmatmul.f32.gmra.mxu0 %v275
      %v343 = vpop.f32.mrf.mxu0
      %v344 = vadd.f32 0.0, %v343
      %345 = vmatmul.f32.gmra.mxu0 %v278
      %v346 = vpop.f32.mrf.mxu0
      %v347 = vadd.f32 0.0, %v346
      %348 = vmatmul.f32.gmra.mxu0 %v281
      %v349 = vpop.f32.mrf.mxu0
      %v350 = vadd.f32 0.0, %v349
      %351 = vmatmul.f32.gmra.mxu0 %v284
      %v352 = vpop.f32.mrf.mxu0
      %v353 = vadd.f32 0.0, %v352
      %354 = vmatmul.f32.gmra.mxu0 %v287
      %v355 = vpop.f32.mrf.mxu0
      %v356 = vadd.f32 0.0, %v355
      %357 = vmatmul.f32.gmra.mxu0 %v290
      %v358 = vpop.f32.mrf.mxu0
      %v359 = vadd.f32 0.0, %v358
      %360 = vdwg.mxu0
      %361 = vst [vmem:[%s212] sm:$0xff] %v314
      %362 = vst [vmem:[%s212 + $0x8] sm:$0xff] %v317
      %363 = vst [vmem:[%s212 + $0x10] sm:$0xff] %v320
      %364 = vst [vmem:[%s212 + $0x18] sm:$0xff] %v323
      %365 = vst [vmem:[%s212 + $0x20] sm:$0xff] %v326
      %366 = vst [vmem:[%s212 + $0x28] sm:$0xff] %v329
      %367 = vst [vmem:[%s212 + $0x30] sm:$0xff] %v332
      %368 = vst [vmem:[%s212 + $0x38] sm:$0xff] %v335
      %369 = vst [vmem:[%s212 + $0x40] sm:$0xff] %v338
      %370 = vst [vmem:[%s212 + $0x48] sm:$0xff] %v341
      %371 = vst [vmem:[%s212 + $0x50] sm:$0xff] %v344
      %372 = vst [vmem:[%s212 + $0x58] sm:$0xff] %v347
      %373 = vst [vmem:[%s212 + $0x60] sm:$0xff] %v350
      %374 = vst [vmem:[%s212 + $0x68] sm:$0xff] %v353
      %375 = vst [vmem:[%s212 + $0x70] sm:$0xff] %v356
      %376 = vst [vmem:[%s212 + $0x78] sm:$0xff] %v359
      %v377 = vadd.f32 %v314, %v317
      %v378 = vadd.f32 %v377, %v320
      %v379 = vadd.f32 %v378, %v323
      %v380 = vadd.f32 %v379, %v326
      %v381 = vadd.f32 %v380, %v329
      %v382 = vadd.f32 %v381, %v332
      %v383 = vadd.f32 %v382, %v335
      %v384 = vadd.f32 %v383, %v338
      %v385 = vadd.f32 %v384, %v341
      %v386 = vadd.f32 %v385, %v344
      %v387 = vadd.f32 %v386, %v347
      %v388 = vadd.f32 %v387, %v350
      %v389 = vadd.f32 %v388, %v353
      %v390 = vadd.f32 %v389, %v356
      %v391 = vadd.f32 %v390, %v359
      %v392 = vrot.slane %v391, 4
      %v393 = vadd.f32 %v391, %v392
      %v394 = vrot.slane %v393, 2
      %v395 = vadd.f32 %v393, %v394
      %v396 = vrot.slane %v395, 1
      %v397 = vadd.f32 %v395, %v396
      %v398 = vmul.f32 %v314, %v314
      %v399 = vmul.f32 %v317, %v317
      %v400 = vmul.f32 %v320, %v320
      %v401 = vmul.f32 %v323, %v323
      %v402 = vmul.f32 %v326, %v326
      %v403 = vmul.f32 %v329, %v329
      %v404 = vmul.f32 %v332, %v332
      %v405 = vmul.f32 %v335, %v335
      %v406 = vmul.f32 %v338, %v338
      %v407 = vmul.f32 %v341, %v341
      %v408 = vmul.f32 %v344, %v344
      %v409 = vmul.f32 %v347, %v347
      %v410 = vmul.f32 %v350, %v350
      %v411 = vmul.f32 %v353, %v353
      %v412 = vmul.f32 %v356, %v356
      %v413 = vmul.f32 %v359, %v359
      %v414 = vadd.f32 %v398, %v399
      %v415 = vadd.f32 %v414, %v400
      %v416 = vadd.f32 %v415, %v401
      %v417 = vadd.f32 %v416, %v402
      %v418 = vadd.f32 %v417, %v403
      %v419 = vadd.f32 %v418, %v404
      %v420 = vadd.f32 %v419, %v405
      %v421 = vadd.f32 %v420, %v406
      %v422 = vadd.f32 %v421, %v407
      %v423 = vadd.f32 %v422, %v408
      %v424 = vadd.f32 %v423, %v409
      %v425 = vadd.f32 %v424, %v410
      %v426 = vadd.f32 %v425, %v411
      %v427 = vadd.f32 %v426, %v412
      %v428 = vadd.f32 %v427, %v413
      %v429 = vrot.slane %v428, 4
      %v430 = vadd.f32 %v428, %v429
      %v431 = vrot.slane %v430, 2
      %v432 = vadd.f32 %v430, %v431
      %v433 = vrot.slane %v432, 1
      %v434 = vadd.f32 %v432, %v433
      %435 = vst [vmem:[%s217] sm:$0xff] %v397
      %436 = vst [vmem:[%s221] sm:$0xff] %v434
      %s437 = smul.u32 16, %s16
      %p438 = scmp.lt.s32.totalorder %s437, 63
      %s439 = scalar_select %p438, %s437, 63
      %s440 = smul.addr %s439, 8
      %s441 = scalar_lea.vmem %s2, %s440
      %p442 = scmp.lt.s32.totalorder %s16, 3
      %s443 = scalar_select %p442, %s16, 3
      %s444 = smul.addr %s443, 8
      %s445 = scalar_lea.vmem %s3, %s444
      %p446 = scmp.lt.s32.totalorder %s16, 3
      %s447 = scalar_select %p446, %s16, 3
      %s448 = smul.addr %s447, 8
      %s449 = scalar_lea.vmem %s4, %s448
      // Predicated region
      $region29: #{conv_bn_silu.2} parent=27 // pred_check
        %p450 = pneg %p81
      $region30: #{conv_bn_silu.2} parent=27 // pred_check_branch
        %452 = sbr.rel (%p450) target = $region32
      $region31: #{conv_bn_silu.2} parent=27 // pred_region
        %s453 = smul.u32 16, %s16
      $region32: #{conv_bn_silu.2} parent=27 // pred_fallthru
        _
      // Predicated region
      $region33: #{conv_bn_silu.2} parent=27 // pred_check
        %p454 = pneg %p107
      $region34: #{conv_bn_silu.2} parent=27 // pred_check_branch
        %456 = sbr.rel (%p454) target = $region36
      $region35: #{conv_bn_silu.2} parent=27 // pred_region
        _
      $region36: #{conv_bn_silu.2} parent=27 // pred_fallthru
        _
      // Predicated region
      $region37: #{conv_bn_silu.2} parent=27 // pred_check
        %p457 = pneg %p133
      $region38: #{conv_bn_silu.2} parent=27 // pred_check_branch
        %459 = sbr.rel (%p457) target = $region40
      $region39: #{conv_bn_silu.2} parent=27 // pred_region
        _
      $region40: #{conv_bn_silu.2} parent=27 // pred_fallthru
        _
    $region28: #{conv_bn_silu.2} parent=5 // pred_fallthru
      _
    %p460 = scmp.le.s32.totalorder 2, %s11
    // Predicated region
    $region41: #{conv_bn_silu.2} parent=5 // pred_check
      %p461 = pneg %p460
    $region42: #{conv_bn_silu.2} parent=5 // pred_check_branch
      %463 = sbr.rel (%p461) target = $region44
    $region43: #{conv_bn_silu.2} parent=5 // pred_region
      %s464 = ssub.s32 %s11, 2
      // Predicated region
      $region45: #{conv_bn_silu.2} parent=43 // pred_check
        %p465 = pneg %p87
      $region46: #{conv_bn_silu.2} parent=43 // pred_check_branch
        %467 = sbr.rel (%p465) target = $region48
      $region47: #{conv_bn_silu.2} parent=43 // pred_region
        %s468 = smul.u32 16, %s17
        %p469 = scmp.lt.s32.totalorder %s468, 63
        %s470 = scalar_select %p469, %s468, 63
        %s471 = smul.addr %s470, 8
        %s472 = scalar_lea.vmem %s2, %s471
      $region48: #{conv_bn_silu.2} parent=43 // pred_fallthru
        _
      // Predicated region
      $region49: #{conv_bn_silu.2} parent=43 // pred_check
        %p473 = pneg %p113
      $region50: #{conv_bn_silu.2} parent=43 // pred_check_branch
        %475 = sbr.rel (%p473) target = $region52
      $region51: #{conv_bn_silu.2} parent=43 // pred_region
        %p476 = scmp.lt.s32.totalorder %s17, 3
        %s477 = scalar_select %p476, %s17, 3
        %s478 = smul.addr %s477, 8
        %s479 = scalar_lea.vmem %s3, %s478
      $region52: #{conv_bn_silu.2} parent=43 // pred_fallthru
        _
      // Predicated region
      $region53: #{conv_bn_silu.2} parent=43 // pred_check
        %p480 = pneg %p139
      $region54: #{conv_bn_silu.2} parent=43 // pred_check_branch
        %482 = sbr.rel (%p480) target = $region56
      $region55: #{conv_bn_silu.2} parent=43 // pred_region
        %p483 = scmp.lt.s32.totalorder %s17, 3
        %s484 = scalar_select %p483, %s17, 3
        %s485 = smul.addr %s484, 8
        %s486 = scalar_lea.vmem %s4, %s485
      $region56: #{conv_bn_silu.2} parent=43 // pred_fallthru
        _
    $region44: #{conv_bn_silu.2} parent=5 // pred_fallthru
      _
  $region6: #{conv_bn_silu.2} parent=0 // loop_footer
    %s15 = sadd.s32 1, %s11
  $region7: #{conv_bn_silu.2} parent=0 // loop_footer_branch
    %10 = sbr.rel target = $region3
  $region8: #{conv_bn_silu.2} parent=0 // loop_exit
    _

// kernel: conv_bn_silu.3
$region0: #{conv_bn_silu.3}
  #allocation0 [shape = 'u32[]', space=smem, size = 0x4, offset = 0x4, fixed_abs, tag = 'smem constant byte address 0x4 - core index']
  #allocation1 [shape = 'u32[72,128]{1,0:T(1,128)}', space=vmem, size = 0x9000, scoped, tag = 'internal scratch']
  %s0 = inlined_call_operand.vmem [shape: f32[512,128], index: 0, kind: input, shape index: {}, may-alias: {0,3}]
  %s1 = inlined_call_operand.vmem [shape: f32[1,128], index: 1, kind: input, shape index: {}]
  %s2 = inlined_call_operand.vmem [shape: f32[1,128], index: 2, kind: input, shape index: {}]
  %s3 = inlined_call_operand.vmem [shape: f32[512,128], index: 3, kind: output, shape index: {}, may-alias: {0,3}]
  %s4 = sld [smem:[#allocation0]]
  $region45: #{conv_bn_silu.3} parent=0
    _
  %s6 = ssub.s32 1, %s4
  %s7 = scalar_select 0, %s6, %s4
  loop: start=0, step=1, limit=6
  $region2: #{conv_bn_silu.3} parent=0 // loop_pre_header
    _
  $region3: #{conv_bn_silu.3} parent=0 // loop_header
    %s9 = sphi 0, %s13
    %p10 = scmp.ge.s32.totalorder %s9, 6
    %s19 = sphi 0, %s21
    %s22 = sphi 0, %s19
    %s23 = sphi 0, %s22
    %s39 = sphi 0, %s23
    %s43 = sphi 0, %s43
    %s45 = sphi 0, %s43
    %s46 = sphi 0, %s45
    %s60 = sphi 0, %s46
    %s64 = sphi 0, %s64
    %s66 = sphi 0, %s64
    %s67 = sphi 0, %s66
    %s81 = sphi 0, %s67
    %s87 = sphi 0, %s89
    %s90 = sphi 0, %s87
    %s91 = sphi 0, %s90
    %s107 = sphi 0, %s91
  $region4: #{conv_bn_silu.3} parent=0 // loop_header_branch
    %12 = sbr.rel (%p10) target = $region8
  $region5: #{conv_bn_silu.3} parent=0 // loop_body
    %s14 = ssub.s32 %s9, 1
    %s15 = ssub.s32 %s9, 2
    %s16 = sadd.s32 %s9, 1
    %s17 = ssub.s32 %s9, %s16
    %p18 = scmp.eq.s32.totalorder %s17, 0
    %s20 = sadd.s32 %s19, 1
    %s21 = scalar_select %p18, %s19, %s20
    %p24 = pneg %p18
    %p25 = scmp.eq.s32.totalorder %s9, 3
    %p26 = por %p24, %p25
    %p27 = scmp.ne.s32.totalorder %s19, %s22
    %p28 = scmp.eq.s32.totalorder %s9, 0
    %p29 = por %p27, %p28
    %p30 = scmp.ne.s32.totalorder %s19, %s22
    %p31 = scmp.eq.s32.totalorder %s14, 3
    %p32 = por %p30, %p31
    %p33 = scmp.ne.s32.totalorder %s22, %s23
    %p34 = scmp.eq.s32.totalorder %s14, 0
    %p35 = por %p33, %p34
    %p36 = scmp.ne.s32.totalorder %s22, %s23
    %p37 = scmp.eq.s32.totalorder %s15, 3
    %p38 = por %p36, %p37
    %p40 = scmp.ne.s32.totalorder %s23, %s39
    %p41 = scmp.eq.s32.totalorder %s15, 0
    %p42 = por %p40, %p41
    %s44 = sadd.s32 %s43, 1
    %p47 = scmp.eq.s32.totalorder %s9, 3
    %p48 = scmp.ne.s32.totalorder %s43, %s45
    %p49 = scmp.eq.s32.totalorder %s9, 0
    %p50 = por %p48, %p49
    %p51 = scmp.ne.s32.totalorder %s43, %s45
    %p52 = scmp.eq.s32.totalorder %s14, 3
    %p53 = por %p51, %p52
    %p54 = scmp.ne.s32.totalorder %s45, %s46
    %p55 = scmp.eq.s32.totalorder %s14, 0
    %p56 = por %p54, %p55
    %p57 = scmp.ne.s32.totalorder %s45, %s46
    %p58 = scmp.eq.s32.totalorder %s15, 3
    %p59 = por %p57, %p58
    %p61 = scmp.ne.s32.totalorder %s46, %s60
    %p62 = scmp.eq.s32.totalorder %s15, 0
    %p63 = por %p61, %p62
    %s65 = sadd.s32 %s64, 1
    %p68 = scmp.eq.s32.totalorder %s9, 3
    %p69 = scmp.ne.s32.totalorder %s64, %s66
    %p70 = scmp.eq.s32.totalorder %s9, 0
    %p71 = por %p69, %p70
    %p72 = scmp.ne.s32.totalorder %s64, %s66
    %p73 = scmp.eq.s32.totalorder %s14, 3
    %p74 = por %p72, %p73
    %p75 = scmp.ne.s32.totalorder %s66, %s67
    %p76 = scmp.eq.s32.totalorder %s14, 0
    %p77 = por %p75, %p76
    %p78 = scmp.ne.s32.totalorder %s66, %s67
    %p79 = scmp.eq.s32.totalorder %s15, 3
    %p80 = por %p78, %p79
    %p82 = scmp.ne.s32.totalorder %s67, %s81
    %p83 = scmp.eq.s32.totalorder %s15, 0
    %p84 = por %p82, %p83
    %s85 = ssub.s32 %s9, %s16
    %p86 = scmp.eq.s32.totalorder %s85, 0
    %s88 = sadd.s32 %s87, 1
    %s89 = scalar_select %p86, %s87, %s88
    %p92 = pneg %p86
    %p93 = scmp.eq.s32.totalorder %s9, 3
    %p94 = por %p92, %p93
    %p95 = scmp.ne.s32.totalorder %s87, %s90
    %p96 = scmp.eq.s32.totalorder %s9, 0
    %p97 = por %p95, %p96
    %p98 = scmp.ne.s32.totalorder %s87, %s90
    %p99 = scmp.eq.s32.totalorder %s14, 3
    %p100 = por %p98, %p99
    %p101 = scmp.ne.s32.totalorder %s90, %s91
    %p102 = scmp.eq.s32.totalorder %s14, 0
    %p103 = por %p101, %p102
    %p104 = scmp.ne.s32.totalorder %s90, %s91
    %p105 = scmp.eq.s32.totalorder %s15, 3
    %p106 = por %p104, %p105
    %p108 = scmp.ne.s32.totalorder %s91, %s107
    %p109 = scmp.eq.s32.totalorder %s15, 0
    %p110 = por %p108, %p109
    %p111 = scmp.le.s32.totalorder 1, %s9
    %p112 = scmp.lt.s32.totalorder %s9, 5
    %p113 = pnand %p111, %p112
    %p114 = pneg %p113
    // Predicated region
    $region9: #{conv_bn_silu.3} parent=5 // pred_check
      _
    $region10: #{conv_bn_silu.3} parent=5 // pred_check_branch
      %116 = sbr.rel (%p113) target = $region12
    $region11: #{conv_bn_silu.3} parent=5 // pred_region
      %s117 = ssub.s32 %s9, 1
      // Predicated region
      $region13: #{conv_bn_silu.3} parent=11 // pred_check
        %p118 = pneg %p56
      $region14: #{conv_bn_silu.3} parent=11 // pred_check_branch
        %120 = sbr.rel (%p118) target = $region16
      $region15: #{conv_bn_silu.3} parent=11 // pred_region
        _
      $region16: #{conv_bn_silu.3} parent=11 // pred_fallthru
        _
      // Predicated region
      $region17: #{conv_bn_silu.3} parent=11 // pred_check
        %p121 = pneg %p77
      $region18: #{conv_bn_silu.3} parent=11 // pred_check_branch
        %123 = sbr.rel (%p121) target = $region20
      $region19: #{conv_bn_silu.3} parent=11 // pred_region
        _
      $region20: #{conv_bn_silu.3} parent=11 // pred_fallthru
        _
    $region12: #{conv_bn_silu.3} parent=5 // pred_fallthru
      _
    %p124 = scmp.lt.s32.totalorder %s9, 4
    // Predicated region
    $region21: #{conv_bn_silu.3} parent=5 // pred_check
      %p125 = pneg %p124
    $region22: #{conv_bn_silu.3} parent=5 // pred_check_branch
      %127 = sbr.rel (%p125) target = $region24
    $region23: #{conv_bn_silu.3} parent=5 // pred_region
      // Predicated region
      $region25: #{conv_bn_silu.3} parent=23 // pred_check
        %p128 = pneg %p29
      $region26: #{conv_bn_silu.3} parent=23 // pred_check_branch
        %130 = sbr.rel (%p128) target = $region28
      $region27: #{conv_bn_silu.3} parent=23 // pred_region
        %s131 = smul.u32 16, %s9
        %p132 = scmp.lt.s32.totalorder %s131, 63
        %s133 = scalar_select %p132, %s131, 63
        %s134 = smul.addr %s133, 8
        %s135 = scalar_lea.vmem %s0, %s134
        %s136 = smul.u32 16, %s9
      $region28: #{conv_bn_silu.3} parent=23 // pred_fallthru
        _
    $region24: #{conv_bn_silu.3} parent=5 // pred_fallthru
      _
    %p137 = scmp.le.s32.totalorder 1, %s9
    %p138 = scmp.lt.s32.totalorder %s9, 5
    %p139 = pnand %p137, %p138
    %p140 = pneg %p139
    // Predicated region
    $region29: #{conv_bn_silu.3} parent=5 // pred_check
      _
    $region30: #{conv_bn_silu.3} parent=5 // pred_check_branch
      %142 = sbr.rel (%p139) target = $region32
    $region31: #{conv_bn_silu.3} parent=5 // pred_region
      %s143 = ssub.s32 %s9, 1
      %s144 = smul.u32 16, %s14
      %p145 = scmp.lt.s32.totalorder %s144, 63
      %s146 = scalar_select %p145, %s144, 63
      %s147 = smul.addr %s146, 8
      %s148 = scalar_lea.vmem %s0, %s147
      %p149 = pneg %p35
      %p150 = pneg %p32
      %p151 = pneg %p56
      %p152 = pneg %p53
      %p153 = pneg %p77
      %p154 = pneg %p74
      %p155 = pneg %p103
      %p156 = pneg %p100
      %s157 = smul.u32 16, %s14
      %p158 = scmp.lt.s32.totalorder %s157, 63
      %s159 = scalar_select %p158, %s157, 63
      %s160 = smul.addr %s159, 8
      %s161 = scalar_lea.vmem %s3, %s160
      %s162 = smul.u32 16, %s14
      %p163 = scmp.lt.s32.totalorder %s162, 63
      %s164 = scalar_select %p163, %s162, 63
      %s165 = smul.addr %s164, 8
      %s166 = scalar_lea.vmem %s0, %s165
      %s167 = smul.u32 16, %s14
      %s168 = smul.u32 16, %s14
      %p169 = scmp.lt.s32.totalorder %s168, 63
      %s170 = scalar_select %p169, %s168, 63
      %s171 = smul.addr %s170, 8
      %s172 = scalar_lea.vmem %s3, %s171
      %s173 = smul.u32 16, %s14
      %v174 = vld [vmem:[%s166] sm:$0xff]
      %v175 = vld [vmem:[%s166 + $0x8] sm:$0xff]
      %v176 = vld [vmem:[%s166 + $0x10] sm:$0xff]
      %v177 = vld [vmem:[%s166 + $0x18] sm:$0xff]
      %v178 = vld [vmem:[%s166 + $0x20] sm:$0xff]
      %v179 = vld [vmem:[%s166 + $0x28] sm:$0xff]
      %v180 = vld [vmem:[%s166 + $0x30] sm:$0xff]
      %v181 = vld [vmem:[%s166 + $0x38] sm:$0xff]
      %v182 = vld [vmem:[%s166 + $0x40] sm:$0xff]
      %v183 = vld [vmem:[%s166 + $0x48] sm:$0xff]
      %v184 = vld [vmem:[%s166 + $0x50] sm:$0xff]
      %v185 = vld [vmem:[%s166 + $0x58] sm:$0xff]
      %v186 = vld [vmem:[%s166 + $0x60] sm:$0xff]
      %v187 = vld [vmem:[%s166 + $0x68] sm:$0xff]
      %v188 = vld [vmem:[%s166 + $0x70] sm:$0xff]
      %v189 = vld [vmem:[%s166 + $0x78] sm:$0xff]
      %v190 = vld [vmem:[%s1] sm:$0x1]
      %v192 = vperm.slane %v190, 0
      %v194 = vmul.f32 %v174, %v192
      %v195 = vmul.f32 %v175, %v192
      %v196 = vmul.f32 %v176, %v192
      %v197 = vmul.f32 %v177, %v192
      %v198 = vmul.f32 %v178, %v192
      %v199 = vmul.f32 %v179, %v192
      %v200 = vmul.f32 %v180, %v192
      %v201 = vmul.f32 %v181, %v192
      %v202 = vmul.f32 %v182, %v192
      %v203 = vmul.f32 %v183, %v192
      %v204 = vmul.f32 %v184, %v192
      %v205 = vmul.f32 %v185, %v192
      %v206 = vmul.f32 %v186, %v192
      %v207 = vmul.f32 %v187, %v192
      %v208 = vmul.f32 %v188, %v192
      %v209 = vmul.f32 %v189, %v192
      %v210 = vld [vmem:[%s2] sm:$0x1]
      %v212 = vperm.slane %v210, 0
      %v214 = vadd.f32 %v194, %v212
      %v215 = vadd.f32 %v195, %v212
      %v216 = vadd.f32 %v196, %v212
      %v217 = vadd.f32 %v197, %v212
      %v218 = vadd.f32 %v198, %v212
      %v219 = vadd.f32 %v199, %v212
      %v220 = vadd.f32 %v200, %v212
      %v221 = vadd.f32 %v201, %v212
      %v222 = vadd.f32 %v202, %v212
      %v223 = vadd.f32 %v203, %v212
      %v224 = vadd.f32 %v204, %v212
      %v225 = vadd.f32 %v205, %v212
      %v226 = vadd.f32 %v206, %v212
      %v227 = vadd.f32 %v207, %v212
      %v228 = vadd.f32 %v208, %v212
      %v229 = vadd.f32 %v209, %v212
      %v230 = vxor.u32 %v214, 2147483648
      %v231 = vxor.u32 %v215, 2147483648
      %v232 = vxor.u32 %v216, 2147483648
      %v233 = vxor.u32 %v217, 2147483648
      %v234 = vxor.u32 %v218, 2147483648
      %v235 = vxor.u32 %v219, 2147483648
      %v236 = vxor.u32 %v220, 2147483648
      %v237 = vxor.u32 %v221, 2147483648
      %v238 = vxor.u32 %v222, 2147483648
      %v239 = vxor.u32 %v223, 2147483648
      %v240 = vxor.u32 %v224, 2147483648
      %v241 = vxor.u32 %v225, 2147483648
      %v242 = vxor.u32 %v226, 2147483648
      %v243 = vxor.u32 %v227, 2147483648
      %v244 = vxor.u32 %v228, 2147483648
      %v245 = vxor.u32 %v229, 2147483648
      %v246 = vmul.f32 %v230, 1.442695
      %v247 = vpow.pop %v246
      %v248 = vmul.f32 %v231, 1.442695
      %v249 = vpow.pop %v248
      %v250 = vmul.f32 %v232, 1.442695
      %v251 = vpow.pop %v250
      %v252 = vmul.f32 %v233, 1.442695
      %v253 = vpow.pop %v252
      %v254 = vmul.f32 %v234, 1.442695
      %v255 = vpow.pop %v254
      %v256 = vmul.f32 %v235, 1.442695
      %v257 = vpow.pop %v256
      %v258 = vmul.f32 %v236, 1.442695
      %v259 = vpow.pop %v258
      %v260 = vmul.f32 %v237, 1.442695
      %v261 = vpow.pop %v260
      %v262 = vmul.f32 %v238, 1.442695
      %v263 = vpow.pop %v262
      %v264 = vmul.f32 %v239, 1.442695
      %v265 = vpow.pop %v264
      %v266 = vmul.f32 %v240, 1.442695
      %v267 = vpow.pop %v266
      %v268 = vmul.f32 %v241, 1.442695
      %v269 = vpow.pop %v268
      %v270 = vmul.f32 %v242, 1.442695
      %v271 = vpow.pop %v270
      %v272 = vmul.f32 %v243, 1.442695
      %v273 = vpow.pop %v272
      %v274 = vmul.f32 %v244, 1.442695
      %v275 = vpow.pop %v274
      %v276 = vmul.f32 %v245, 1.442695
      %v277 = vpow.pop %v276
      %v278 = vadd.f32 %v247, 1.0
      %v279 = vadd.f32 %v249, 1.0
      %v280 = vadd.f32 %v251, 1.0
      %v281 = vadd.f32 %v253, 1.0
      %v282 = vadd.f32 %v255, 1.0
      %v283 = vadd.f32 %v257, 1.0
      %v284 = vadd.f32 %v259, 1.0
      %v285 = vadd.f32 %v261, 1.0
      %v286 = vadd.f32 %v263, 1.0
      %v287 = vadd.f32 %v265, 1.0
      %v288 = vadd.f32 %v267, 1.0
      %v289 = vadd.f32 %v269, 1.0
      %v290 = vadd.f32 %v271, 1.0
      %v291 = vadd.f32 %v273, 1.0
      %v292 = vadd.f32 %v275, 1.0
      %v293 = vadd.f32 %v277, 1.0
      %v294 = vrcp.pop %v278
      %v295 = vmul.f32 %v278, %v294
      %v296 = vsub.f32 1.0, %v295
      %v297 = vmul.f32 %v294, %v296
      %v298 = vadd.f32 %v294, %v297
      %vm299 = vweird.f32 %v278
      %vm300 = vweird.f32 %v294
      %vm301 = vmor %vm299, %vm300
      %v302 = vsel %vm301, %v294, %v298
      %v303 = vand.u32 2147483647, %v278
      %vm304 = vcmp.eq.f32.partialorder %v303, 8.507059e+37
      %v305 = vand.u32 %v278, 2147483648
      %v306 = vor.u32 1.1754944e-38, %v305
      %v307 = vsel %vm304, %v306, %v302
      %v308 = vmul.f32 1.0, %v307
      %v309 = vrcp.pop %v279
      %v310 = vmul.f32 %v279, %v309
      %v311 = vsub.f32 1.0, %v310
      %v312 = vmul.f32 %v309, %v311
      %v313 = vadd.f32 %v309, %v312
      %vm314 = vweird.f32 %v279
      %vm315 = vweird.f32 %v309
      %vm316 = vmor %vm314, %vm315
      %v317 = vsel %vm316, %v309, %v313
      %v318 = vand.u32 2147483647, %v279
      %vm319 = vcmp.eq.f32.partialorder %v318, 8.507059e+37
      %v320 = vand.u32 %v279, 2147483648
      %v321 = vor.u32 1.1754944e-38, %v320
      %v322 = vsel %vm319, %v321, %v317
      %v323 = vmul.f32 1.0, %v322
      %v324 = vrcp.pop %v280
      %v325 = vmul.f32 %v280, %v324
      %v326 = vsub.f32 1.0, %v325
      %v327 = vmul.f32 %v324, %v326
      %v328 = vadd.f32 %v324, %v327
      %vm329 = vweird.f32 %v280
      %vm330 = vweird.f32 %v324
      %vm331 = vmor %vm329, %vm330
      %v332 = vsel %vm331, %v324, %v328
      %v333 = vand.u32 2147483647, %v280
      %vm334 = vcmp.eq.f32.partialorder %v333, 8.507059e+37
      %v335 = vand.u32 %v280, 2147483648
      %v336 = vor.u32 1.1754944e-38, %v335
      %v337 = vsel %vm334, %v336, %v332
      %v338 = vmul.f32 1.0, %v337
      %v339 = vrcp.pop %v281
      %v340 = vmul.f32 %v281, %v339
      %v341 = vsub.f32 1.0, %v340
      %v342 = vmul.f32 %v339, %v341
      %v343 = vadd.f32 %v339, %v342
      %vm344 = vweird.f32 %v281
      %vm345 = vweird.f32 %v339
      %vm346 = vmor %vm344, %vm345
      %v347 = vsel %vm346, %v339, %v343
      %v348 = vand.u32 2147483647, %v281
      %vm349 = vcmp.eq.f32.partialorder %v348, 8.507059e+37
      %v350 = vand.u32 %v281, 2147483648
      %v351 = vor.u32 1.1754944e-38, %v350
      %v352 = vsel %vm349, %v351, %v347
      %v353 = vmul.f32 1.0, %v352
      %v354 = vrcp.pop %v282
      %v355 = vmul.f32 %v282, %v354
      %v356 = vsub.f32 1.0, %v355
      %v357 = vmul.f32 %v354, %v356
      %v358 = vadd.f32 %v354, %v357
      %vm359 = vweird.f32 %v282
      %vm360 = vweird.f32 %v354
      %vm361 = vmor %vm359, %vm360
      %v362 = vsel %vm361, %v354, %v358
      %v363 = vand.u32 2147483647, %v282
      %vm364 = vcmp.eq.f32.partialorder %v363, 8.507059e+37
      %v365 = vand.u32 %v282, 2147483648
      %v366 = vor.u32 1.1754944e-38, %v365
      %v367 = vsel %vm364, %v366, %v362
      %v368 = vmul.f32 1.0, %v367
      %v369 = vrcp.pop %v283
      %v370 = vmul.f32 %v283, %v369
      %v371 = vsub.f32 1.0, %v370
      %v372 = vmul.f32 %v369, %v371
      %v373 = vadd.f32 %v369, %v372
      %vm374 = vweird.f32 %v283
      %vm375 = vweird.f32 %v369
      %vm376 = vmor %vm374, %vm375
      %v377 = vsel %vm376, %v369, %v373
      %v378 = vand.u32 2147483647, %v283
      %vm379 = vcmp.eq.f32.partialorder %v378, 8.507059e+37
      %v380 = vand.u32 %v283, 2147483648
      %v381 = vor.u32 1.1754944e-38, %v380
      %v382 = vsel %vm379, %v381, %v377
      %v383 = vmul.f32 1.0, %v382
      %v384 = vrcp.pop %v284
      %v385 = vmul.f32 %v284, %v384
      %v386 = vsub.f32 1.0, %v385
      %v387 = vmul.f32 %v384, %v386
      %v388 = vadd.f32 %v384, %v387
      %vm389 = vweird.f32 %v284
      %vm390 = vweird.f32 %v384
      %vm391 = vmor %vm389, %vm390
      %v392 = vsel %vm391, %v384, %v388
      %v393 = vand.u32 2147483647, %v284
      %vm394 = vcmp.eq.f32.partialorder %v393, 8.507059e+37
      %v395 = vand.u32 %v284, 2147483648
      %v396 = vor.u32 1.1754944e-38, %v395
      %v397 = vsel %vm394, %v396, %v392
      %v398 = vmul.f32 1.0, %v397
      %v399 = vrcp.pop %v285
      %v400 = vmul.f32 %v285, %v399
      %v401 = vsub.f32 1.0, %v400
      %v402 = vmul.f32 %v399, %v401
      %v403 = vadd.f32 %v399, %v402
      %vm404 = vweird.f32 %v285
      %vm405 = vweird.f32 %v399
      %vm406 = vmor %vm404, %vm405
      %v407 = vsel %vm406, %v399, %v403
      %v408 = vand.u32 2147483647, %v285
      %vm409 = vcmp.eq.f32.partialorder %v408, 8.507059e+37
      %v410 = vand.u32 %v285, 2147483648
      %v411 = vor.u32 1.1754944e-38, %v410
      %v412 = vsel %vm409, %v411, %v407
      %v413 = vmul.f32 1.0, %v412
      %v414 = vrcp.pop %v286
      %v415 = vmul.f32 %v286, %v414
      %v416 = vsub.f32 1.0, %v415
      %v417 = vmul.f32 %v414, %v416
      %v418 = vadd.f32 %v414, %v417
      %vm419 = vweird.f32 %v286
      %vm420 = vweird.f32 %v414
      %vm421 = vmor %vm419, %vm420
      %v422 = vsel %vm421, %v414, %v418
      %v423 = vand.u32 2147483647, %v286
      %vm424 = vcmp.eq.f32.partialorder %v423, 8.507059e+37
      %v425 = vand.u32 %v286, 2147483648
      %v426 = vor.u32 1.1754944e-38, %v425
      %v427 = vsel %vm424, %v426, %v422
      %v428 = vmul.f32 1.0, %v427
      %v429 = vrcp.pop %v287
      %v430 = vmul.f32 %v287, %v429
      %v431 = vsub.f32 1.0, %v430
      %v432 = vmul.f32 %v429, %v431
      %v433 = vadd.f32 %v429, %v432
      %vm434 = vweird.f32 %v287
      %vm435 = vweird.f32 %v429
      %vm436 = vmor %vm434, %vm435
      %v437 = vsel %vm436, %v429, %v433
      %v438 = vand.u32 2147483647, %v287
      %vm439 = vcmp.eq.f32.partialorder %v438, 8.507059e+37
      %v440 = vand.u32 %v287, 2147483648
      %v441 = vor.u32 1.1754944e-38, %v440
      %v442 = vsel %vm439, %v441, %v437
      %v443 = vmul.f32 1.0, %v442
      %v444 = vrcp.pop %v288
      %v445 = vmul.f32 %v288, %v444
      %v446 = vsub.f32 1.0, %v445
      %v447 = vmul.f32 %v444, %v446
      %v448 = vadd.f32 %v444, %v447
      %vm449 = vweird.f32 %v288
      %vm450 = vweird.f32 %v444
      %vm451 = vmor %vm449, %vm450
      %v452 = vsel %vm451, %v444, %v448
      %v453 = vand.u32 2147483647, %v288
      %vm454 = vcmp.eq.f32.partialorder %v453, 8.507059e+37
      %v455 = vand.u32 %v288, 2147483648
      %v456 = vor.u32 1.1754944e-38, %v455
      %v457 = vsel %vm454, %v456, %v452
      %v458 = vmul.f32 1.0, %v457
      %v459 = vrcp.pop %v289
      %v460 = vmul.f32 %v289, %v459
      %v461 = vsub.f32 1.0, %v460
      %v462 = vmul.f32 %v459, %v461
      %v463 = vadd.f32 %v459, %v462
      %vm464 = vweird.f32 %v289
      %vm465 = vweird.f32 %v459
      %vm466 = vmor %vm464, %vm465
      %v467 = vsel %vm466, %v459, %v463
      %v468 = vand.u32 2147483647, %v289
      %vm469 = vcmp.eq.f32.partialorder %v468, 8.507059e+37
      %v470 = vand.u32 %v289, 2147483648
      %v471 = vor.u32 1.1754944e-38, %v470
      %v472 = vsel %vm469, %v471, %v467
      %v473 = vmul.f32 1.0, %v472
      %v474 = vrcp.pop %v290
      %v475 = vmul.f32 %v290, %v474
      %v476 = vsub.f32 1.0, %v475
      %v477 = vmul.f32 %v474, %v476
      %v478 = vadd.f32 %v474, %v477
      %vm479 = vweird.f32 %v290
      %vm480 = vweird.f32 %v474
      %vm481 = vmor %vm479, %vm480
      %v482 = vsel %vm481, %v474, %v478
      %v483 = vand.u32 2147483647, %v290
      %vm484 = vcmp.eq.f32.partialorder %v483, 8.507059e+37
      %v485 = vand.u32 %v290, 2147483648
      %v486 = vor.u32 1.1754944e-38, %v485
      %v487 = vsel %vm484, %v486, %v482
      %v488 = vmul.f32 1.0, %v487
      %v489 = vrcp.pop %v291
      %v490 = vmul.f32 %v291, %v489
      %v491 = vsub.f32 1.0, %v490
      %v492 = vmul.f32 %v489, %v491
      %v493 = vadd.f32 %v489, %v492
      %vm494 = vweird.f32 %v291
      %vm495 = vweird.f32 %v489
      %vm496 = vmor %vm494, %vm495
      %v497 = vsel %vm496, %v489, %v493
      %v498 = vand.u32 2147483647, %v291
      %vm499 = vcmp.eq.f32.partialorder %v498, 8.507059e+37
      %v500 = vand.u32 %v291, 2147483648
      %v501 = vor.u32 1.1754944e-38, %v500
      %v502 = vsel %vm499, %v501, %v497
      %v503 = vmul.f32 1.0, %v502
      %v504 = vrcp.pop %v292
      %v505 = vmul.f32 %v292, %v504
      %v506 = vsub.f32 1.0, %v505
      %v507 = vmul.f32 %v504, %v506
      %v508 = vadd.f32 %v504, %v507
      %vm509 = vweird.f32 %v292
      %vm510 = vweird.f32 %v504
      %vm511 = vmor %vm509, %vm510
      %v512 = vsel %vm511, %v504, %v508
      %v513 = vand.u32 2147483647, %v292
      %vm514 = vcmp.eq.f32.partialorder %v513, 8.507059e+37
      %v515 = vand.u32 %v292, 2147483648
      %v516 = vor.u32 1.1754944e-38, %v515
      %v517 = vsel %vm514, %v516, %v512
      %v518 = vmul.f32 1.0, %v517
      %v519 = vrcp.pop %v293
      %v520 = vmul.f32 %v293, %v519
      %v521 = vsub.f32 1.0, %v520
      %v522 = vmul.f32 %v519, %v521
      %v523 = vadd.f32 %v519, %v522
      %vm524 = vweird.f32 %v293
      %vm525 = vweird.f32 %v519
      %vm526 = vmor %vm524, %vm525
      %v527 = vsel %vm526, %v519, %v523
      %v528 = vand.u32 2147483647, %v293
      %vm529 = vcmp.eq.f32.partialorder %v528, 8.507059e+37
      %v530 = vand.u32 %v293, 2147483648
      %v531 = vor.u32 1.1754944e-38, %v530
      %v532 = vsel %vm529, %v531, %v527
      %v533 = vmul.f32 1.0, %v532
      %v534 = vmul.f32 %v214, %v308
      %v535 = vmul.f32 %v215, %v323
      %v536 = vmul.f32 %v216, %v338
      %v537 = vmul.f32 %v217, %v353
      %v538 = vmul.f32 %v218, %v368
      %v539 = vmul.f32 %v219, %v383
      %v540 = vmul.f32 %v220, %v398
      %v541 = vmul.f32 %v221, %v413
      %v542 = vmul.f32 %v222, %v428
      %v543 = vmul.f32 %v223, %v443
      %v544 = vmul.f32 %v224, %v458
      %v545 = vmul.f32 %v225, %v473
      %v546 = vmul.f32 %v226, %v488
      %v547 = vmul.f32 %v227, %v503
      %v548 = vmul.f32 %v228, %v518
      %v549 = vmul.f32 %v229, %v533
      %550 = vst [vmem:[%s172] sm:$0xff] %v534
      %551 = vst [vmem:[%s172 + $0x8] sm:$0xff] %v535
      %552 = vst [vmem:[%s172 + $0x10] sm:$0xff] %v536
      %553 = vst [vmem:[%s172 + $0x18] sm:$0xff] %v537
      %554 = vst [vmem:[%s172 + $0x20] sm:$0xff] %v538
      %555 = vst [vmem:[%s172 + $0x28] sm:$0xff] %v539
      %556 = vst [vmem:[%s172 + $0x30] sm:$0xff] %v540
      %557 = vst [vmem:[%s172 + $0x38] sm:$0xff] %v541
      %558 = vst [vmem:[%s172 + $0x40] sm:$0xff] %v542
      %559 = vst [vmem:[%s172 + $0x48] sm:$0xff] %v543
      %560 = vst [vmem:[%s172 + $0x50] sm:$0xff] %v544
      %561 = vst [vmem:[%s172 + $0x58] sm:$0xff] %v545
      %562 = vst [vmem:[%s172 + $0x60] sm:$0xff] %v546
      %563 = vst [vmem:[%s172 + $0x68] sm:$0xff] %v547
      %564 = vst [vmem:[%s172 + $0x70] sm:$0xff] %v548
      %565 = vst [vmem:[%s172 + $0x78] sm:$0xff] %v549
      %s566 = smul.u32 16, %s14
      %p567 = scmp.lt.s32.totalorder %s566, 63
      %s568 = scalar_select %p567, %s566, 63
      %s569 = smul.addr %s568, 8
      %s570 = scalar_lea.vmem %s3, %s569
      // Predicated region
      $region33: #{conv_bn_silu.3} parent=31 // pred_check
        %p571 = pneg %p100
      $region34: #{conv_bn_silu.3} parent=31 // pred_check_branch
        %573 = sbr.rel (%p571) target = $region36
      $region35: #{conv_bn_silu.3} parent=31 // pred_region
        %s574 = smul.u32 16, %s14
      $region36: #{conv_bn_silu.3} parent=31 // pred_fallthru
        _
    $region32: #{conv_bn_silu.3} parent=5 // pred_fallthru
      _
    %p575 = scmp.le.s32.totalorder 2, %s9
    // Predicated region
    $region37: #{conv_bn_silu.3} parent=5 // pred_check
      %p576 = pneg %p575
    $region38: #{conv_bn_silu.3} parent=5 // pred_check_branch
      %578 = sbr.rel (%p576) target = $region40
    $region39: #{conv_bn_silu.3} parent=5 // pred_region
      %s579 = ssub.s32 %s9, 2
      // Predicated region
      $region41: #{conv_bn_silu.3} parent=39 // pred_check
        %p580 = pneg %p106
      $region42: #{conv_bn_silu.3} parent=39 // pred_check_branch
        %582 = sbr.rel (%p580) target = $region44
      $region43: #{conv_bn_silu.3} parent=39 // pred_region
        %s583 = smul.u32 16, %s15
        %p584 = scmp.lt.s32.totalorder %s583, 63
        %s585 = scalar_select %p584, %s583, 63
        %s586 = smul.addr %s585, 8
        %s587 = scalar_lea.vmem %s3, %s586
      $region44: #{conv_bn_silu.3} parent=39 // pred_fallthru
        _
    $region40: #{conv_bn_silu.3} parent=5 // pred_fallthru
      _
  $region6: #{conv_bn_silu.3} parent=0 // loop_footer
    %s13 = sadd.s32 1, %s9
  $region7: #{conv_bn_silu.3} parent=0 // loop_footer_branch
    %8 = sbr.rel target = $region3
  $region8: #{conv_bn_silu.3} parent=0 // loop_exit
    _

</llo_original>
